<compile_context>
chip_gen: v5e
topology: v5e:2x2
jax: 0.10.0
libtpu: 0.0.40
codegen_flags: <defaults>
</compile_context>

<pallas_src>
import functools
import math

import jax
import jax.numpy as jnp
from jax.experimental import pallas as pl
from jax.experimental.pallas import tpu as pltpu


def _round_up(x, m):
    return ((x + m - 1) // m) * m


def _cdiv(a, b):
    return -(-a // b)


# ----------------------------------------------------------------------------
# fused decoder kernel: one query tile per inner grid step, partial-loss block
# per outer ("parallel") grid step
# ----------------------------------------------------------------------------
def _decoder_kernel(num_queries, inner_steps,      # static python ints (partial-applied)
                    x0_ref, x1_ref,                # (G, TILE, L) bf16; slot 0 = positive
                    w1_ref,                        # (3, L, L) bf16  (W1 split by feature chunk)
                    b1_ref,                        # (1, L) f32
                    w2_ref,                        # (1, L) f32 (row of the (1,L) PyTorch weight)
                    b2_ref,                        # (1, 1) f32
                    out_ref):                      # (1, 128) resident partial-loss block
    p = pl.program_id(0)                           # partial-loss super-block ("parallel")
    i = pl.program_id(1)                           # query-tile step ("arbitrary" reduction)
    g, tile, lat = x0_ref.shape

    # (G, tile, L) -> (G*tile, L): leading-dim collapse; tile % 8 == 0 and L is the
    # full minor dim, so this is a layout no-op (no VMEM copy, unlike concatenate).
    x0 = x0_ref[...].reshape(g * tile, lat)
    x1 = x1_ref[...].reshape(g * tile, lat)

    # Linear(3L -> L): the concat [x0, x1, x0*x1] is folded into three K=L bf16
    # matmuls against the pre-split W1 chunks, f32 MXU accumulation.
    h = (jnp.dot(x0, w1_ref[0], preferred_element_type=jnp.float32)
         + jnp.dot(x1, w1_ref[1], preferred_element_type=jnp.float32)
         + jnp.dot(x0 * x1, w1_ref[2], preferred_element_type=jnp.float32)
         + b1_ref[...])
    h = jnp.maximum(h, 0.0)                                        # ReLU

    # Linear(L -> 1) as a lane reduce (avoids an N=1 MXU op).
    logit = jnp.sum(h * w2_ref[...], axis=-1, keepdims=True) + b2_ref[...]
    # score = exp(sigmoid(z)); sigmoid via tanh folds exp + reciprocal into one
    # EUP op, so the lane-sparse (M,1) tail needs 2 transcendental pushes, not 3.
    # TODO(synk): a fully lane-dense tail (relayout the logit column to
    #             (M/128, 128) before the transcendentals) is a further win.
    sig = 0.5 + 0.5 * jnp.tanh(0.5 * logit)
    scr = jnp.exp(sig)                                             # (G*tile, 1)

    scr = scr.reshape(g, tile, 1)
    pos_scr = scr[0]                                               # (tile, 1)
    neg_sum = jnp.sum(scr[1:], axis=0)                             # (tile, 1)
    denom = neg_sum + pos_scr + 1e-8                               # = neg_scr + 1e-8
    ratio = pos_scr * pl.reciprocal(denom, approx=True)

    # Mask query rows that only exist because of padding to a tile multiple.
    rows = (jax.lax.broadcasted_iota(jnp.int32, (tile, 1), 0)
            + (p * inner_steps + i) * tile)
    valid = (rows < num_queries).astype(jnp.float32)
    tile_loss = -jnp.sum((ratio + 1e-8) * valid, axis=0, keepdims=True)  # (1, 1)

    @pl.when(i == 0)
    def _():
        out_ref[...] = jnp.zeros_like(out_ref)
    out_ref[...] += tile_loss                    # broadcast across the 128 lanes


# ----------------------------------------------------------------------------
# wrapper: TrivialDecoder.forward(embeds, pos, neg) -> scalar loss
# ----------------------------------------------------------------------------
def trivial_decoder_loss(params, embeds, pos, neg, *, tile=512, num_partials=2):
    embed = embeds[-1] if isinstance(embeds, (list, tuple)) else embeds
    B = pos.shape[0]
    nneg = neg.shape[1]
    latdim = embed.shape[1]
    g = 1 + nneg

    # Query tiling: tb rows per step (multiple of 8, capped at `tile`); the steps
    # are split into P independent partial-loss blocks so v7x's two TensorCores
    # both get work (P collapses to 1 for small batches / v5e / v6e no harm).
    tb = min(tile, _round_up(B, 8))
    n_steps = _cdiv(B, tb)
    P = num_partials if n_steps >= num_partials else 1
    inner_steps = _cdiv(n_steps, P)
    bp = P * inner_steps * tb
    pad = bp - B

    # Stack the positive pair into slot 0 of the negatives' group axis and
    # transpose/pad the TINY int32 index arrays (not the gathered floats), so the
    # gather emits the kernel layout (G, Bp, L) directly: no HBM float transpose
    # and no in-kernel concatenation.
    idx0 = jnp.concatenate([pos[:, 0][None, :], jnp.transpose(neg[:, :, 0])], axis=0)
    idx1 = jnp.concatenate([pos[:, 1][None, :], jnp.transpose(neg[:, :, 1])], axis=0)
    if pad:
        idx0 = jnp.pad(idx0, ((0, 0), (0, pad)))     # padded rows -> embed[0], masked in-kernel
        idx1 = jnp.pad(idx1, ((0, 0), (0, pad)))
    # TODO(synk): for very large batches move this gather into the kernel
    #             (scalar-prefetch the indices + VMEM-resident / DMA'd embed table).
    x0 = jnp.take(embed, idx0, axis=0).astype(jnp.bfloat16)        # (G, Bp, L)
    x1 = jnp.take(embed, idx1, axis=0).astype(jnp.bfloat16)

    w1 = params["w1"].astype(jnp.bfloat16)                         # (3, L, L) for the MXU

    x_spec = pl.BlockSpec((g, tb, latdim), lambda p, i: (0, p * inner_steps + i, 0))

    def const_spec(shape):
        zeros = (0,) * len(shape)
        return pl.BlockSpec(shape, lambda p, i: zeros)

    out = pl.pallas_call(
        functools.partial(_decoder_kernel, B, inner_steps),
        out_shape=jax.ShapeDtypeStruct((1, P * 128), jnp.float32),
        grid_spec=pltpu.PrefetchScalarGridSpec(
            num_scalar_prefetch=0,
            grid=(P, inner_steps),
            in_specs=[
                x_spec,                                   # x0
                x_spec,                                   # x1
                const_spec((3, latdim, latdim)),          # W1 (merged chunks)
                const_spec((1, latdim)),                  # b1
                const_spec((1, latdim)),                  # w2 row
                const_spec((1, 1)),                       # b2
            ],
            # Lane-dense (1, 128) partial-loss block per parallel super-block.
            out_specs=pl.BlockSpec((1, 128), lambda p, i: (0, p)),
        ),
        compiler_params=pltpu.CompilerParams(
            # Outer axis: independent partial losses -> "parallel" (v7x megacore).
            # Inner axis reduces into its resident (1,128) block -> "arbitrary".
            dimension_semantics=("parallel", "arbitrary"),
        ),
    )(x0, x1, w1, params["b1"], params["w2"], params["b2"])

    # Each partial block holds its loss broadcast across 128 lanes; take lane 0.
    return jnp.sum(out.reshape(P, 128)[:, 0])


# ----------------------------------------------------------------------------
# parameter init (mirrors the PyTorch __init__: xavier_uniform weights, zero bias)
# ----------------------------------------------------------------------------
def _xavier_uniform(key, shape):
    fan_out, fan_in = shape
    limit = math.sqrt(6.0 / (fan_in + fan_out))
    return jax.random.uniform(key, shape, jnp.float32, -limit, limit)


def init_params(key, latdim):
    k1, k2 = jax.random.split(key)
    w1_t = _xavier_uniform(k1, (latdim, 3 * latdim))      # torch Linear weight (out=L, in=3L)
    w2 = _xavier_uniform(k2, (1, latdim))                 # torch layout (out=1, in=L)
    return {
        # input-major (3L, L) reshaped to (3, L, L): chunk 0 hit by e0, 1 by e1, 2 by e0*e1
        "w1": jnp.transpose(w1_t).reshape(3, latdim, latdim),
        "b1": jnp.zeros((1, latdim), jnp.float32),
        "w2": w2,
        "b2": jnp.zeros((1, 1), jnp.float32),
    }


# ----------------------------------------------------------------------------
# pure-JAX reference (mirrors the PyTorch forward exactly, all f32)
# ----------------------------------------------------------------------------
def reference_loss(params, embeds, pos, neg):
    embed = embeds[-1] if isinstance(embeds, (list, tuple)) else embeds
    latdim = embed.shape[1]
    w1 = params["w1"].reshape(3 * latdim, latdim)         # (3L, L) input-major

    def mlp(x):
        h = jnp.maximum(x @ w1 + params["b1"][0], 0.0)
        s = h @ params["w2"][0] + params["b2"][0, 0]
        return jax.nn.sigmoid(s)

    e = embed
    pe = jnp.concatenate([e[pos[:, 0]], e[pos[:, 1]],
                          e[pos[:, 0]] * e[pos[:, 1]]], axis=-1)
    ne = jnp.concatenate([e[neg[:, :, 0]], e[neg[:, :, 1]],
                          e[neg[:, :, 0]] * e[neg[:, :, 1]]], axis=-1)
    pos_scr = jnp.exp(mlp(pe))                            # (B,)
    neg_scr = jnp.exp(mlp(ne))                            # (B, NNEG)
    neg_scr = jnp.sum(neg_scr, -1) + pos_scr
    return -jnp.sum(pos_scr / (neg_scr + 1e-8) + 1e-8)


# ----------------------------------------------------------------------------
# TODO(synk): forward-only; jax.grad would need a custom_vjp / backward kernel.
# ----------------------------------------------------------------------------
if __name__ == "__main__":
    key = jax.random.PRNGKey(0)
    k_emb, k_par, k_pos, k_neg = jax.random.split(key, 4)

    LATDIM = 32          # args.latdim
    N_NODES = 64         # rows of embeds[-1]
    B = 8                # number of positive pairs
    NNEG = 4             # negatives per positive

    params = init_params(k_par, LATDIM)
    embed = 0.1 * jax.random.normal(k_emb, (N_NODES, LATDIM), jnp.float32)
    pos = jax.random.randint(k_pos, (B, 2), 0, N_NODES)
    neg = jax.random.randint(k_neg, (B, NNEG, 2), 0, N_NODES)
    embeds = [embed]     # the module uses embeds[-1]

    loss = trivial_decoder_loss(params, embeds, pos, neg)
    loss = jax.block_until_ready(loss)
    assert loss.shape == () and loss.dtype == jnp.float32

    ref = reference_loss(params, embeds, pos, neg)
    diff = float(jnp.abs(loss - ref))
    if diff > 1e-2 * (1.0 + abs(float(ref))):
        raise AssertionError(
            f"kernel mismatch vs reference: kernel={float(loss)} ref={float(ref)} |diff|={diff}")

    print("KERNEL_OK")
</pallas_src>

<mosaic_0001>
module attributes {stable_mosaic.version = 11 : i64} {
  func.func @_decoder_kernel(%arg0: i32, %arg1: i32, %arg2: memref<5x8x32xbf16, #tpu.memory_space<vmem>>, %arg3: memref<5x8x32xbf16, #tpu.memory_space<vmem>>, %arg4: memref<3x32x32xbf16, #tpu.memory_space<vmem>>, %arg5: memref<1x32xf32, #tpu.memory_space<vmem>>, %arg6: memref<1x32xf32, #tpu.memory_space<vmem>>, %arg7: memref<1x1xf32, #tpu.memory_space<vmem>>, %arg8: memref<1x128xf32, #tpu.memory_space<vmem>>) attributes {dimension_semantics = [#tpu.dimension_semantics<parallel>, #tpu.dimension_semantics<arbitrary>], iteration_bounds = array<i64: 1, 1>, scalar_prefetch = 0 : i64, scratch_operands = 0 : i64, tpu.core_type = #tpu.core_type<tc>, window_params = [{transform_indices = @transform_0, window_bounds = array<i64: 5, 8, 32>}, {transform_indices = @transform_1, window_bounds = array<i64: 5, 8, 32>}, {pipeline_mode = #tpu.pipeline_mode<synchronous>, transform_indices = @transform_2, window_bounds = array<i64: 3, 32, 32>}, {pipeline_mode = #tpu.pipeline_mode<synchronous>, transform_indices = @transform_3, window_bounds = array<i64: 1, 32>}, {pipeline_mode = #tpu.pipeline_mode<synchronous>, transform_indices = @transform_4, window_bounds = array<i64: 1, 32>}, {pipeline_mode = #tpu.pipeline_mode<synchronous>, transform_indices = @transform_5, window_bounds = array<i64: 1, 1>}, {transform_indices = @transform_6, window_bounds = array<i64: 1, 128>}]} {
    %c0 = arith.constant 0 : index
    %c0_0 = arith.constant 0 : index
    %c0_1 = arith.constant 0 : index
    %0 = vector.load %arg2[%c0, %c0_0, %c0_1] : memref<5x8x32xbf16, #tpu.memory_space<vmem>>, vector<5x8x32xbf16>
    %1 = vector.shape_cast %0 : vector<5x8x32xbf16> to vector<40x32xbf16>
    %c0_2 = arith.constant 0 : index
    %c0_3 = arith.constant 0 : index
    %c0_4 = arith.constant 0 : index
    %2 = vector.load %arg3[%c0_2, %c0_3, %c0_4] : memref<5x8x32xbf16, #tpu.memory_space<vmem>>, vector<5x8x32xbf16>
    %3 = vector.shape_cast %2 : vector<5x8x32xbf16> to vector<40x32xbf16>
    %c0_5 = arith.constant 0 : index
    %c0_6 = arith.constant 0 : index
    %c0_7 = arith.constant 0 : index
    %4 = vector.load %arg4[%c0_5, %c0_6, %c0_7] : memref<3x32x32xbf16, #tpu.memory_space<vmem>>, vector<1x32x32xbf16>
    %5 = vector.shape_cast %4 : vector<1x32x32xbf16> to vector<32x32xbf16>
    %cst = arith.constant dense<0.000000e+00> : vector<40x32xf32>
    %6 = tpu.matmul %1, %5, %cst {dimension_numbers = #tpu.dot_dimension_numbers<[1], [0], [0], [1], [0, 0, 1, 1], [], []>} : vector<40x32xbf16>, vector<32x32xbf16>, vector<40x32xf32> -> vector<40x32xf32>
    %c1 = arith.constant 1 : index
    %c0_8 = arith.constant 0 : index
    %c0_9 = arith.constant 0 : index
    %7 = vector.load %arg4[%c1, %c0_8, %c0_9] : memref<3x32x32xbf16, #tpu.memory_space<vmem>>, vector<1x32x32xbf16>
    %8 = vector.shape_cast %7 : vector<1x32x32xbf16> to vector<32x32xbf16>
    %cst_10 = arith.constant dense<0.000000e+00> : vector<40x32xf32>
    %9 = tpu.matmul %3, %8, %cst_10 {dimension_numbers = #tpu.dot_dimension_numbers<[1], [0], [0], [1], [0, 0, 1, 1], [], []>} : vector<40x32xbf16>, vector<32x32xbf16>, vector<40x32xf32> -> vector<40x32xf32>
    %10 = arith.addf %6, %9 : vector<40x32xf32>
    %11 = arith.mulf %1, %3 : vector<40x32xbf16>
    %c2 = arith.constant 2 : index
    %c0_11 = arith.constant 0 : index
    %c0_12 = arith.constant 0 : index
    %12 = vector.load %arg4[%c2, %c0_11, %c0_12] : memref<3x32x32xbf16, #tpu.memory_space<vmem>>, vector<1x32x32xbf16>
    %13 = vector.shape_cast %12 : vector<1x32x32xbf16> to vector<32x32xbf16>
    %cst_13 = arith.constant dense<0.000000e+00> : vector<40x32xf32>
    %14 = tpu.matmul %11, %13, %cst_13 {dimension_numbers = #tpu.dot_dimension_numbers<[1], [0], [0], [1], [0, 0, 1, 1], [], []>} : vector<40x32xbf16>, vector<32x32xbf16>, vector<40x32xf32> -> vector<40x32xf32>
    %15 = arith.addf %10, %14 : vector<40x32xf32>
    %c0_14 = arith.constant 0 : index
    %c0_15 = arith.constant 0 : index
    %16 = vector.load %arg5[%c0_14, %c0_15] : memref<1x32xf32, #tpu.memory_space<vmem>>, vector<1x32xf32>
    %17 = vector.broadcast %16 : vector<1x32xf32> to vector<40x32xf32>
    %18 = arith.addf %15, %17 : vector<40x32xf32>
    %cst_16 = arith.constant 0.000000e+00 : f32
    %19 = vector.broadcast %cst_16 : f32 to vector<40x32xf32>
    %20 = arith.maximumf %18, %19 : vector<40x32xf32>
    %c0_17 = arith.constant 0 : index
    %c0_18 = arith.constant 0 : index
    %21 = vector.load %arg6[%c0_17, %c0_18] : memref<1x32xf32, #tpu.memory_space<vmem>>, vector<1x32xf32>
    %22 = vector.broadcast %21 : vector<1x32xf32> to vector<40x32xf32>
    %23 = arith.mulf %20, %22 : vector<40x32xf32>
    %cst_19 = arith.constant dense<0.000000e+00> : vector<40xf32>
    %24 = vector.multi_reduction <add>, %23, %cst_19 [1] : vector<40x32xf32> to vector<40xf32>
    %25 = vector.shape_cast %24 : vector<40xf32> to vector<40x1xf32>
    %c0_20 = arith.constant 0 : index
    %c0_21 = arith.constant 0 : index
    %26 = vector.load %arg7[%c0_20, %c0_21] : memref<1x1xf32, #tpu.memory_space<vmem>>, vector<1x1xf32>
    %27 = vector.broadcast %26 : vector<1x1xf32> to vector<40x1xf32>
    %28 = arith.addf %25, %27 : vector<40x1xf32>
    %cst_22 = arith.constant 5.000000e-01 : f32
    %29 = vector.broadcast %cst_22 : f32 to vector<40x1xf32>
    %30 = arith.mulf %29, %28 : vector<40x1xf32>
    %31 = math.tanh %30 : vector<40x1xf32>
    %cst_23 = arith.constant 5.000000e-01 : f32
    %32 = vector.broadcast %cst_23 : f32 to vector<40x1xf32>
    %33 = arith.mulf %32, %31 : vector<40x1xf32>
    %cst_24 = arith.constant 5.000000e-01 : f32
    %34 = vector.broadcast %cst_24 : f32 to vector<40x1xf32>
    %35 = arith.addf %34, %33 : vector<40x1xf32>
    %36 = math.exp %35 : vector<40x1xf32>
    %37 = vector.shape_cast %36 : vector<40x1xf32> to vector<5x8x1xf32>
    %38 = vector.extract_strided_slice %37 {offsets = [0, 0, 0], sizes = [1, 8, 1], strides = [1, 1, 1]} : vector<5x8x1xf32> to vector<1x8x1xf32>
    %39 = vector.shape_cast %38 : vector<1x8x1xf32> to vector<8x1xf32>
    %40 = vector.extract_strided_slice %37 {offsets = [1, 0, 0], sizes = [4, 8, 1], strides = [1, 1, 1]} : vector<5x8x1xf32> to vector<4x8x1xf32>
    %cst_25 = arith.constant dense<0.000000e+00> : vector<8x1xf32>
    %41 = vector.multi_reduction <add>, %40, %cst_25 [0] : vector<4x8x1xf32> to vector<8x1xf32>
    %42 = arith.addf %41, %39 : vector<8x1xf32>
    %cst_26 = arith.constant 9.99999993E-9 : f32
    %43 = vector.broadcast %cst_26 : f32 to vector<8x1xf32>
    %44 = arith.addf %42, %43 : vector<8x1xf32>
    %45 = tpu.reciprocal %44 {approx = true} : vector<8x1xf32> -> vector<8x1xf32>
    %46 = arith.mulf %39, %45 : vector<8x1xf32>
    %47 = tpu.iota {dimensions = array<i32: 0>} : vector<8x1xi32>
    %c1_i32 = arith.constant 1 : i32
    %48 = arith.muli %arg0, %c1_i32 : i32
    %49 = arith.addi %48, %arg1 : i32
    %c8_i32 = arith.constant 8 : i32
    %50 = arith.muli %49, %c8_i32 : i32
    %51 = vector.broadcast %50 : i32 to vector<8x1xi32>
    %52 = arith.addi %47, %51 : vector<8x1xi32>
    %c8_i32_27 = arith.constant 8 : i32
    %53 = vector.broadcast %c8_i32_27 : i32 to vector<8x1xi32>
    %54 = arith.cmpi slt, %52, %53 : vector<8x1xi32>
    %55 = arith.extui %54 : vector<8x1xi1> to vector<8x1xi32>
    %56 = arith.sitofp %55 : vector<8x1xi32> to vector<8x1xf32>
    %cst_28 = arith.constant 9.99999993E-9 : f32
    %57 = vector.broadcast %cst_28 : f32 to vector<8x1xf32>
    %58 = arith.addf %46, %57 : vector<8x1xf32>
    %59 = arith.mulf %58, %56 : vector<8x1xf32>
    %cst_29 = arith.constant dense<0.000000e+00> : vector<1xf32>
    %60 = vector.multi_reduction <add>, %59, %cst_29 [0] : vector<8x1xf32> to vector<1xf32>
    %61 = vector.shape_cast %60 : vector<1xf32> to vector<1x1xf32>
    %cst_30 = arith.constant 0.000000e+00 : f32
    %62 = vector.broadcast %cst_30 : f32 to vector<1x1xf32>
    %63 = arith.subf %62, %61 : vector<1x1xf32>
    %c0_i32 = arith.constant 0 : i32
    %64 = arith.cmpi eq, %arg1, %c0_i32 : i32
    %65 = arith.extui %64 : i1 to i32
    %c0_i32_31 = arith.constant 0 : i32
    %66 = arith.cmpi ne, %65, %c0_i32_31 : i32
    scf.if %66 {
      %cst_36 = arith.constant 0.000000e+00 : f32
      %71 = vector.broadcast %cst_36 : f32 to vector<1x128xf32>
      %c0_37 = arith.constant 0 : index
      %c0_38 = arith.constant 0 : index
      %72 = vector.load %arg8[%c0_37, %c0_38] : memref<1x128xf32, #tpu.memory_space<vmem>>, vector<1x128xf32>
      tpu.vector_store %arg8[%c0_37, %c0_38], %71 {strides = array<i32>} : memref<1x128xf32, #tpu.memory_space<vmem>>, vector<1x128xf32>,
    } else {
    }
    %c0_32 = arith.constant 0 : index
    %c0_33 = arith.constant 0 : index
    %67 = vector.load %arg8[%c0_32, %c0_33] : memref<1x128xf32, #tpu.memory_space<vmem>>, vector<1x128xf32>
    %68 = vector.broadcast %63 : vector<1x1xf32> to vector<1x128xf32>
    %69 = arith.addf %67, %68 : vector<1x128xf32>
    %c0_34 = arith.constant 0 : index
    %c0_35 = arith.constant 0 : index
    %70 = vector.load %arg8[%c0_34, %c0_35] : memref<1x128xf32, #tpu.memory_space<vmem>>, vector<1x128xf32>
    tpu.vector_store %arg8[%c0_34, %c0_35], %69 {strides = array<i32>} : memref<1x128xf32, #tpu.memory_space<vmem>>, vector<1x128xf32>,
    return
  }
  func.func @transform_0(%arg0: i32, %arg1: i32) -> (i32, i32, i32) {
    %c1_i32 = arith.constant 1 : i32
    %0 = arith.muli %arg0, %c1_i32 : i32
    %1 = arith.addi %0, %arg1 : i32
    %c0_i32 = arith.constant 0 : i32
    %c0_i32_0 = arith.constant 0 : i32
    %c0_i32_1 = arith.constant 0 : i32
    return %c0_i32, %1, %c0_i32_0 : i32, i32, i32
  }
  func.func @transform_1(%arg0: i32, %arg1: i32) -> (i32, i32, i32) {
    %c1_i32 = arith.constant 1 : i32
    %0 = arith.muli %arg0, %c1_i32 : i32
    %1 = arith.addi %0, %arg1 : i32
    %c0_i32 = arith.constant 0 : i32
    %c0_i32_0 = arith.constant 0 : i32
    %c0_i32_1 = arith.constant 0 : i32
    return %c0_i32, %1, %c0_i32_0 : i32, i32, i32
  }
  func.func @transform_2(%arg0: i32, %arg1: i32) -> (i32, i32, i32) {
    %c0_i32 = arith.constant 0 : i32
    %c0_i32_0 = arith.constant 0 : i32
    %c0_i32_1 = arith.constant 0 : i32
    %c0_i32_2 = arith.constant 0 : i32
    return %c0_i32, %c0_i32_0, %c0_i32_1 : i32, i32, i32
  }
  func.func @transform_3(%arg0: i32, %arg1: i32) -> (i32, i32) {
    %c0_i32 = arith.constant 0 : i32
    %c0_i32_0 = arith.constant 0 : i32
    %c0_i32_1 = arith.constant 0 : i32
    return %c0_i32, %c0_i32_0 : i32, i32
  }
  func.func @transform_4(%arg0: i32, %arg1: i32) -> (i32, i32) {
    %c0_i32 = arith.constant 0 : i32
    %c0_i32_0 = arith.constant 0 : i32
    %c0_i32_1 = arith.constant 0 : i32
    return %c0_i32, %c0_i32_0 : i32, i32
  }
  func.func @transform_5(%arg0: i32, %arg1: i32) -> (i32, i32) {
    %c0_i32 = arith.constant 0 : i32
    %c0_i32_0 = arith.constant 0 : i32
    %c0_i32_1 = arith.constant 0 : i32
    return %c0_i32, %c0_i32_0 : i32, i32
  }
  func.func @transform_6(%arg0: i32, %arg1: i32) -> (i32, i32) {
    %c0_i32 = arith.constant 0 : i32
    %c0_i32_0 = arith.constant 0 : i32
    return %c0_i32, %arg0 : i32, i32
  }
}

</mosaic_0001>

<llo_original>
// kernel: tpu_custom_call.1
$region0: #{tpu_custom_call.1}
  #allocation0 [shape = 'u32[]', space=smem, size = 0x4, offset = 0x4, fixed_abs, tag = 'smem constant byte address 0x4 - core index']
  #allocation1 [shape = 'u32[72,128]{1,0:T(1,128)}', space=vmem, size = 0x9000, scoped, tag = 'internal scratch']
  #allocation2 [shape = 'f32[1,1]{1,0:T(1,128)S(1)}', space=vmem, size = 0x200, scoped, tag = 'scoped memory for tpu_custom_call.1']
  %s0 = inlined_call_operand.hbm [shape: bf16[5,8,32], index: 0, kind: input, shape index: {}]
  %s1 = inlined_call_operand.hbm [shape: bf16[5,8,32], index: 1, kind: input, shape index: {}]
  %s2 = inlined_call_operand.hbm [shape: bf16[3,32,32], index: 2, kind: input, shape index: {}]
  %s3 = inlined_call_operand.vmem [shape: f32[1,32], index: 3, kind: input, shape index: {}]
  %s4 = inlined_call_operand.vmem [shape: f32[1,32], index: 4, kind: input, shape index: {}]
  %s5 = inlined_call_operand.<no memory space> [shape: f32[1,1], index: 5, kind: input, shape index: {}]
  %s6 = inlined_call_operand.hbm [shape: f32[1,128], index: 6, kind: output, shape index: {}]
  %s7 = sld [smem:[#allocation0]]
  $region50: #{tpu_custom_call.1} parent=0
    _
  %s9 = ssub.s32 1, %s7
  %s10 = scalar_select 0, %s9, %s7
  %v11 = vstv %s5
  %12 = vst [vmem:[#allocation2] sm:$0x1] %v11
  $region1: #{tpu_custom_call.1} parent=0
    #allocation3 [shape = 'u8[10240]{0}', space=vmem, size = 0x2800, scoped, tag = 'input window, operand 0, single buffered']
    #allocation4 [shape = 's32[1]{0}', space=sflag, size = 0x4, scoped, tag = 'scoped memory for tpu_custom_call.1']
    #allocation5 [shape = 's32[1]{0}', space=sflag, size = 0x4, scoped, tag = 'scoped memory for tpu_custom_call.1']
    #allocation6 [shape = 'u8[10240]{0}', space=vmem, size = 0x2800, scoped, tag = 'input window, operand 1, single buffered']
    #allocation7 [shape = 's32[1]{0}', space=sflag, size = 0x4, scoped, tag = 'scoped memory for tpu_custom_call.1']
    #allocation8 [shape = 'u8[24576]{0}', space=vmem, size = 0x6000, scoped, tag = 'input window, operand 2, single buffered']
    #allocation9 [shape = 'u8[512]{0}', space=vmem, size = 0x400, scoped, tag = 'output window, operand 0, single buffered']
    %13 = vsyncpa [#allocation4], 0
    %14 = vsyncpa [#allocation7], 0
    %15 = vsyncpa [#allocation5], 0
    // Predicated region
    $region2: #{tpu_custom_call.1} parent=1 // pred_check
      _
    $region3: #{tpu_custom_call.1} parent=1 // pred_check_branch
      %17 = sbr.rel (0) target = $region5
    $region4: #{tpu_custom_call.1} parent=1 // pred_region
      %s18 = sadd.s32 0, 0
      %20 = vsyncadd [#allocation4], 0
      %s21 = smul.addr %s18, 4
      %s22 = scalar_lea.hbm %s0, %s21
      %s23 = sshll.u32 %s22, 4
      %s24 = int_to_ptr.hbm [resolvable:$true] %s23
      %s25 = sshll.u32 [#allocation3], 4
      %s26 = int_to_ptr.vmem [resolvable:$true] %s25
      %31 = dma.hbm_to_vmem [thread:$0]  %s24, 320, %s26, [#allocation4], 64, 64, 4
    $region5: #{tpu_custom_call.1} parent=1 // pred_fallthru
      _
    // Predicated region
    $region6: #{tpu_custom_call.1} parent=1 // pred_check
      _
    $region7: #{tpu_custom_call.1} parent=1 // pred_check_branch
      %33 = sbr.rel (0) target = $region9
    $region8: #{tpu_custom_call.1} parent=1 // pred_region
      %s34 = sadd.s32 0, 0
      %36 = vsyncadd [#allocation7], 0
      %s37 = smul.addr %s34, 4
      %s38 = scalar_lea.hbm %s1, %s37
      %s39 = sshll.u32 %s38, 4
      %s40 = int_to_ptr.hbm [resolvable:$true] %s39
      %s41 = sshll.u32 [#allocation6], 4
      %s42 = int_to_ptr.vmem [resolvable:$true] %s41
      %47 = dma.hbm_to_vmem [thread:$0]  %s40, 320, %s42, [#allocation7], 64, 64, 4
    $region9: #{tpu_custom_call.1} parent=1 // pred_fallthru
      _
    // Predicated region
    $region10: #{tpu_custom_call.1} parent=1 // pred_check
      _
    $region11: #{tpu_custom_call.1} parent=1 // pred_check_branch
      %49 = sbr.rel (0) target = $region13
    $region12: #{tpu_custom_call.1} parent=1 // pred_region
      %51 = vsyncadd [#allocation7], 0
      %s52 = sshll.u32 %s2, 4
      %s53 = int_to_ptr.hbm [resolvable:$true] %s52
      %s54 = sshll.u32 [#allocation8], 4
      %s55 = int_to_ptr.vmem [resolvable:$true] %s54
      %60 = dma.hbm_to_vmem [thread:$0]  %s53, 768, %s55, [#allocation7], 64, 64, 4
    $region13: #{tpu_custom_call.1} parent=1 // pred_fallthru
      _
    // Predicated region
    $region14: #{tpu_custom_call.1} parent=1 // pred_check
      _
    $region15: #{tpu_custom_call.1} parent=1 // pred_check_branch
      %62 = sbr.rel (0) target = $region17
    $region16: #{tpu_custom_call.1} parent=1 // pred_region
      _
    $region17: #{tpu_custom_call.1} parent=1 // pred_fallthru
      _
    // Predicated region
    $region18: #{tpu_custom_call.1} parent=1 // pred_check
      _
    $region19: #{tpu_custom_call.1} parent=1 // pred_check_branch
      %64 = sbr.rel (0) target = $region21
    $region20: #{tpu_custom_call.1} parent=1 // pred_region
      _
    $region21: #{tpu_custom_call.1} parent=1 // pred_fallthru
      _
    // Predicated region
    $region22: #{tpu_custom_call.1} parent=1 // pred_check
      _
    $region23: #{tpu_custom_call.1} parent=1 // pred_check_branch
      %66 = sbr.rel (0) target = $region25
    $region24: #{tpu_custom_call.1} parent=1 // pred_region
      _
    $region25: #{tpu_custom_call.1} parent=1 // pred_fallthru
      _
    // Predicated region
    $region26: #{tpu_custom_call.1} parent=1 // pred_check
      _
    $region27: #{tpu_custom_call.1} parent=1 // pred_check_branch
      %68 = sbr.rel (0) target = $region29
    $region28: #{tpu_custom_call.1} parent=1 // pred_region
      %70 = dma.done [#allocation4], 320
    $region29: #{tpu_custom_call.1} parent=1 // pred_fallthru
      _
    // Predicated region
    $region30: #{tpu_custom_call.1} parent=1 // pred_check
      _
    $region31: #{tpu_custom_call.1} parent=1 // pred_check_branch
      %72 = sbr.rel (0) target = $region33
    $region32: #{tpu_custom_call.1} parent=1 // pred_region
      %74 = dma.done [#allocation7], 320
    $region33: #{tpu_custom_call.1} parent=1 // pred_fallthru
      _
    // Predicated region
    $region34: #{tpu_custom_call.1} parent=1 // pred_check
      _
    $region35: #{tpu_custom_call.1} parent=1 // pred_check_branch
      %76 = sbr.rel (0) target = $region37
    $region36: #{tpu_custom_call.1} parent=1 // pred_region
      %78 = dma.done [#allocation7], 768
    $region37: #{tpu_custom_call.1} parent=1 // pred_fallthru
      _
    %s79 = sadd.s32 0, 0
    %s80 = sadd.s32 0, 0
    %v82 = vld [vmem:[#allocation3] sm:$0xf]
    %v83 = vld [vmem:[#allocation3 + $0x4] sm:$0xf]
    %v84 = vld [vmem:[#allocation3 + $0x8] sm:$0xf]
    %v85 = vld [vmem:[#allocation3 + $0xc] sm:$0xf]
    %v86 = vld [vmem:[#allocation3 + $0x10] sm:$0xf]
    %v87 = vld [vmem:[#allocation6] sm:$0xf]
    %v88 = vld [vmem:[#allocation6 + $0x4] sm:$0xf]
    %v89 = vld [vmem:[#allocation6 + $0x8] sm:$0xf]
    %v90 = vld [vmem:[#allocation6 + $0xc] sm:$0xf]
    %v91 = vld [vmem:[#allocation6 + $0x10] sm:$0xf]
    %v92 = vld [vmem:[#allocation8] sm:$0xf]
    %v93 = vld [vmem:[#allocation8 + $0x4] sm:$0xf]
    %v94 = vld [vmem:[#allocation8 + $0x8] sm:$0xf]
    %v95 = vld [vmem:[#allocation8 + $0xc] sm:$0xf]
    %s96 = scalar_lea.vmem [#allocation8], 16
    %v97 = vld [vmem:[%s96] sm:$0xf]
    %v98 = vld [vmem:[%s96 + $0x4] sm:$0xf]
    %v99 = vld [vmem:[%s96 + $0x8] sm:$0xf]
    %v100 = vld [vmem:[%s96 + $0xc] sm:$0xf]
    %v106 = vunpack.c.l.b16 %v87
    %v107 = vunpack.c.l.b16 %v88
    %v108 = vunpack.c.l.b16 %v89
    %v109 = vunpack.c.l.b16 %v90
    %v110 = vunpack.c.l.b16 %v91
    %v111 = vpack.c.b16 %v107, %v106
    %v112 = vpack.c.b16 %v109, %v108
    %v113 = vpack.c.b16 %v110, %v110
    %v118 = vunpack.c.l.b16 %v97
    %v119 = vunpack.c.l.b16 %v98
    %v120 = vunpack.c.l.b16 %v99
    %v121 = vunpack.c.l.b16 %v100
    %v122 = vpack.c.b16 %v119, %v118
    %v123 = vpack.c.b16 %v121, %v120
    %vm126 = vcmask 261120
    %v128 = vsel %vm126, %v111, 0
    %v131 = vsel %vm126, %v112, 0
    %v134 = vsel %vm126, %v113, 0
    %136 = vmatpush.bf16.msra.mxu0 0
    %137 = vmatpush.bf16.msra.mxu0 0
    %138 = vmatpush.bf16.msra.mxu0 0
    %139 = vmatpush.bf16.msra.mxu0 0
    %140 = vmatpush.bf16.msra.mxu0 0
    %141 = vmatpush.bf16.msra.mxu0 0
    %142 = vmatpush.bf16.msra.mxu0 %v123
    %143 = vmatpush.bf16.msra.mxu0 %v122
    %144 = vmatmul.bf16.gmra.mxu0 %v128
    %v145 = vpop.f32.mrf.mxu0
    %v146 = vadd.f32 0.0, %v145
    %v147 = vpop.f32.mrf.mxu0
    %v148 = vadd.f32 0.0, %v147
    %149 = vmatmul.bf16.gmra.mxu0 %v131
    %v150 = vpop.f32.mrf.mxu0
    %v151 = vadd.f32 0.0, %v150
    %v152 = vpop.f32.mrf.mxu0
    %v153 = vadd.f32 0.0, %v152
    %154 = vmatmul.bf16.gmra.mxu0 %v134
    %v155 = vpop.f32.mrf.mxu0
    %v156 = vadd.f32 0.0, %v155
    %v157 = vpop.f32.mrf.mxu0
    %158 = vdwg.mxu0
    %v164 = vunpack.c.l.b16 %v82
    %v165 = vunpack.c.l.b16 %v83
    %v166 = vunpack.c.l.b16 %v84
    %v167 = vunpack.c.l.b16 %v85
    %v168 = vunpack.c.l.b16 %v86
    %v169 = vpack.c.b16 %v165, %v164
    %v170 = vpack.c.b16 %v167, %v166
    %v171 = vpack.c.b16 %v168, %v168
    %v176 = vunpack.c.l.b16 %v92
    %v177 = vunpack.c.l.b16 %v93
    %v178 = vunpack.c.l.b16 %v94
    %v179 = vunpack.c.l.b16 %v95
    %v180 = vpack.c.b16 %v177, %v176
    %v181 = vpack.c.b16 %v179, %v178
    %v185 = vsel %vm126, %v169, 0
    %v188 = vsel %vm126, %v170, 0
    %v191 = vsel %vm126, %v171, 0
    %193 = vmatpush.bf16.msra.mxu0 0
    %194 = vmatpush.bf16.msra.mxu0 0
    %195 = vmatpush.bf16.msra.mxu0 0
    %196 = vmatpush.bf16.msra.mxu0 0
    %197 = vmatpush.bf16.msra.mxu0 0
    %198 = vmatpush.bf16.msra.mxu0 0
    %199 = vmatpush.bf16.msra.mxu0 %v181
    %200 = vmatpush.bf16.msra.mxu0 %v180
    %201 = vmatmul.bf16.gmra.mxu0 %v185
    %v202 = vpop.f32.mrf.mxu0
    %v203 = vadd.f32 %v146, %v202
    %v204 = vpop.f32.mrf.mxu0
    %v205 = vadd.f32 %v148, %v204
    %206 = vmatmul.bf16.gmra.mxu0 %v188
    %v207 = vpop.f32.mrf.mxu0
    %v208 = vadd.f32 %v151, %v207
    %v209 = vpop.f32.mrf.mxu0
    %v210 = vadd.f32 %v153, %v209
    %211 = vmatmul.bf16.gmra.mxu0 %v191
    %v212 = vpop.f32.mrf.mxu0
    %v213 = vadd.f32 %v156, %v212
    %v214 = vpop.f32.mrf.mxu0
    %215 = vdwg.mxu0
    %v216 = vunpack.c.l.bf16 %v82
    %v217 = vunpack.c.l.bf16 %v83
    %v218 = vunpack.c.l.bf16 %v84
    %v219 = vunpack.c.l.bf16 %v85
    %v220 = vunpack.c.l.bf16 %v86
    %v221 = vunpack.c.l.bf16 %v87
    %v222 = vunpack.c.l.bf16 %v88
    %v223 = vunpack.c.l.bf16 %v89
    %v224 = vunpack.c.l.bf16 %v90
    %v225 = vunpack.c.l.bf16 %v91
    %v226 = vmul.f32 %v216, %v221
    %v227 = vmul.f32 %v217, %v222
    %v228 = vmul.f32 %v218, %v223
    %v229 = vmul.f32 %v219, %v224
    %v230 = vmul.f32 %v220, %v225
    %v231 = vpack.c.bf16 %v227, %v226
    %v232 = vpack.c.bf16 %v229, %v228
    %v233 = vpack.c.bf16 %v230, %v230
    %s234 = scalar_lea.vmem [#allocation8], 32
    %v235 = vld [vmem:[%s234] sm:$0xf]
    %v236 = vld [vmem:[%s234 + $0x4] sm:$0xf]
    %v237 = vld [vmem:[%s234 + $0x8] sm:$0xf]
    %v238 = vld [vmem:[%s234 + $0xc] sm:$0xf]
    %v243 = vunpack.c.l.b16 %v235
    %v244 = vunpack.c.l.b16 %v236
    %v245 = vunpack.c.l.b16 %v237
    %v246 = vunpack.c.l.b16 %v238
    %v247 = vpack.c.b16 %v244, %v243
    %v248 = vpack.c.b16 %v246, %v245
    %v252 = vsel %vm126, %v231, 0
    %v255 = vsel %vm126, %v232, 0
    %v258 = vsel %vm126, %v233, 0
    %260 = vmatpush.bf16.msra.mxu0 0
    %261 = vmatpush.bf16.msra.mxu0 0
    %262 = vmatpush.bf16.msra.mxu0 0
    %263 = vmatpush.bf16.msra.mxu0 0
    %264 = vmatpush.bf16.msra.mxu0 0
    %265 = vmatpush.bf16.msra.mxu0 0
    %266 = vmatpush.bf16.msra.mxu0 %v248
    %267 = vmatpush.bf16.msra.mxu0 %v247
    %268 = vmatmul.bf16.gmra.mxu0 %v252
    %v269 = vpop.f32.mrf.mxu0
    %v270 = vadd.f32 0.0, %v269
    %v271 = vpop.f32.mrf.mxu0
    %v272 = vadd.f32 0.0, %v271
    %273 = vmatmul.bf16.gmra.mxu0 %v255
    %v274 = vpop.f32.mrf.mxu0
    %v275 = vadd.f32 0.0, %v274
    %v276 = vpop.f32.mrf.mxu0
    %v277 = vadd.f32 0.0, %v276
    %278 = vmatmul.bf16.gmra.mxu0 %v258
    %v279 = vpop.f32.mrf.mxu0
    %v280 = vadd.f32 0.0, %v279
    %v281 = vpop.f32.mrf.mxu0
    %282 = vdwg.mxu0
    %v283 = vadd.f32 %v203, %v270
    %v284 = vadd.f32 %v205, %v272
    %v285 = vadd.f32 %v208, %v275
    %v286 = vadd.f32 %v210, %v277
    %v287 = vadd.f32 %v213, %v280
    %v288 = vld [vmem:[%s3] sm:$0x1]
    %v290 = vperm.slane %v288, 0
    %v292 = vadd.f32 %v283, %v290
    %v293 = vadd.f32 %v284, %v290
    %v294 = vadd.f32 %v285, %v290
    %v295 = vadd.f32 %v286, %v290
    %v296 = vadd.f32 %v287, %v290
    %v297 = vmax.f32 %v292, 0.0
    %v298 = vmax.f32 %v293, 0.0
    %v299 = vmax.f32 %v294, 0.0
    %v300 = vmax.f32 %v295, 0.0
    %v301 = vmax.f32 %v296, 0.0
    %v302 = vld [vmem:[%s4] sm:$0x1]
    %v304 = vperm.slane %v302, 0
    %v306 = vmul.f32 %v297, %v304
    %v307 = vmul.f32 %v298, %v304
    %v308 = vmul.f32 %v299, %v304
    %v309 = vmul.f32 %v300, %v304
    %v310 = vmul.f32 %v301, %v304
    %v311 = vsel %vm126, %v306, 0.0
    %312 = vadd.xlane.f32.xlu0 %v311
    %v313 = vpop.xlane.xlu0 %312
    %v314 = vsel %vm126, %v307, 0.0
    %315 = vadd.xlane.f32.xlu0 %v314
    %v316 = vpop.xlane.xlu0 %315
    %v317 = vsel %vm126, %v308, 0.0
    %318 = vadd.xlane.f32.xlu0 %v317
    %v319 = vpop.xlane.xlu0 %318
    %v320 = vsel %vm126, %v309, 0.0
    %321 = vadd.xlane.f32.xlu0 %v320
    %v322 = vpop.xlane.xlu0 %321
    %v323 = vsel %vm126, %v310, 0.0
    %324 = vadd.xlane.f32.xlu0 %v323
    %v325 = vpop.xlane.xlu0 %324
    %v326 = vld [vmem:[#allocation2] sm:$0x1]
    %v328 = vperm.slane %v326, 0
    %v330 = vadd.f32 %v313, %v328
    %v331 = vadd.f32 %v316, %v328
    %v332 = vadd.f32 %v319, %v328
    %v333 = vadd.f32 %v322, %v328
    %v334 = vadd.f32 %v325, %v328
    %v335 = vmul.f32 %v330, 0.5
    %v336 = vmul.f32 %v331, 0.5
    %v337 = vmul.f32 %v332, 0.5
    %v338 = vmul.f32 %v333, 0.5
    %v339 = vmul.f32 %v334, 0.5
    %v340 = vtanh.pop %v335
    %v341 = vtanh.pop %v336
    %v342 = vtanh.pop %v337
    %v343 = vtanh.pop %v338
    %v344 = vtanh.pop %v339
    %v345 = vmul.f32 %v340, 0.5
    %v346 = vmul.f32 %v341, 0.5
    %v347 = vmul.f32 %v342, 0.5
    %v348 = vmul.f32 %v343, 0.5
    %v349 = vmul.f32 %v344, 0.5
    %v350 = vadd.f32 %v345, 0.5
    %v351 = vadd.f32 %v346, 0.5
    %v352 = vadd.f32 %v347, 0.5
    %v353 = vadd.f32 %v348, 0.5
    %v354 = vadd.f32 %v349, 0.5
    %v355 = vmul.f32 %v350, 1.442695
    %v356 = vpow.pop %v355
    %v357 = vmul.f32 %v351, 1.442695
    %v358 = vpow.pop %v357
    %v359 = vmul.f32 %v352, 1.442695
    %v360 = vpow.pop %v359
    %v361 = vmul.f32 %v353, 1.442695
    %v362 = vpow.pop %v361
    %v363 = vmul.f32 %v354, 1.442695
    %v364 = vpow.pop %v363
    %vm365 = vcmask 7168
    %v366 = vsel %vm365, %v358, 0.0
    %v367 = vsel %vm365, %v360, 0.0
    %v368 = vadd.f32 %v366, %v367
    %v369 = vsel %vm365, %v362, 0.0
    %v370 = vadd.f32 %v368, %v369
    %v371 = vsel %vm365, %v364, 0.0
    %v372 = vadd.f32 %v370, %v371
    %v373 = vadd.f32 %v372, %v356
    %v374 = vadd.f32 %v373, 1e-08
    %v375 = vrcp.pop %v374
    %v376 = vmul.f32 %v356, %v375
    %v377 = vlaneseq
    %v378 = vshrl.u32 %v377, 7
    %s379 = sadd.s32 0, 0
    %s380 = smul.u32 %s379, 8
    %v381 = vstv %s380
    %v382 = vadd.s32 %v378, %v381
    %vm383 = vcmp.lt.s32.totalorder %v382, 8
    %v384 = vsel %vm383, 1, 0
    %v385 = vcvt.s32.f32 %v384
    %v386 = vadd.f32 %v376, 1e-08
    %v387 = vmul.f32 %v386, %v385
    %v388 = vsel %vm365, %v387, 0.0
    %v389 = vrot.slane %v388, 4
    %v390 = vadd.f32 %v388, %v389
    %v391 = vrot.slane %v390, 2
    %v392 = vadd.f32 %v390, %v391
    %v393 = vrot.slane %v392, 1
    %v394 = vadd.f32 %v392, %v393
    %v395 = vsub.f32 0.0, %v394
    %p396 = scmp.eq.s32.totalorder 0, 0
    // Predicated region
    $region38: #{tpu_custom_call.1} parent=1 // pred_check
      %p397 = pneg %p396
    $region39: #{tpu_custom_call.1} parent=1 // pred_check_branch
      %399 = sbr.rel (%p397) target = $region41
    $region40: #{tpu_custom_call.1} parent=1 // pred_region
      %400 = vst [vmem:[#allocation9] sm:$0x1] 0.0
    $region41: #{tpu_custom_call.1} parent=1 // pred_fallthru
      _
    %v401 = vld [vmem:[#allocation9] sm:$0x1]
    %403 = vset.pattern.permute.xlu0 0
    %404 = vperm.xlu0 %403, %v395
    %v405 = vpop.permute.xlu0 %404
    %v407 = vadd.f32 %v401, %v405
    %408 = vst [vmem:[#allocation9] sm:$0x1] %v407
    // Predicated region
    $region42: #{tpu_custom_call.1} parent=1 // pred_check
      _
    $region43: #{tpu_custom_call.1} parent=1 // pred_check_branch
      %410 = sbr.rel (0) target = $region45
    $region44: #{tpu_custom_call.1} parent=1 // pred_region
      %412 = vsyncadd [#allocation5], 0
      %s414 = sshll.u32 [#allocation9], 4
      %s415 = int_to_ptr.vmem [resolvable:$true] %s414
      %s416 = sshll.u32 %s6, 4
      %s417 = int_to_ptr.hbm [resolvable:$true] %s416
      %419 = dma.vmem_to_hbm [thread:$0]  %s415, 16, %s417, [#allocation5]
    $region45: #{tpu_custom_call.1} parent=1 // pred_fallthru
      _
    // Predicated region
    $region46: #{tpu_custom_call.1} parent=1 // pred_check
      _
    $region47: #{tpu_custom_call.1} parent=1 // pred_check_branch
      %421 = sbr.rel (0) target = $region49
    $region48: #{tpu_custom_call.1} parent=1 // pred_region
      %423 = dma.done [#allocation5], 16
    $region49: #{tpu_custom_call.1} parent=1 // pred_fallthru
      _
    %424 = vsyncpa [#allocation4], 1
    %425 = vsyncpa [#allocation7], 1
    %426 = vsyncpa [#allocation5], 1

</llo_original>
